<compile_context>
chip_gen: v7x
topology: tpu7x:2x2x1
jax: 0.10.0
libtpu: 0.0.40
codegen_flags: <defaults>
</compile_context>

<pallas_src>
import functools

import jax
import jax.numpy as jnp
from jax import lax
from jax.experimental import pallas as pl
from jax.experimental.pallas import tpu as pltpu

LANE = 128      # TPU lane width: pad class dim to a multiple of this
SUBLANE = 8     # sublane count: batch tiles are multiples of this


def _round_up(x, m):
    return (x + m - 1) // m * m


def _fullmodel_kernel(x_ref, w_ref, b_ref, lab_ref, out_ref, stats_ref, *,
                      n_classes):
    # ---- inner model: logits = x @ W + b (MXU, f32 accumulate) ----
    x = x_ref[...]                                    # [tm, D]   f32
    w = w_ref[...]                                    # [D, Cp]   f32 (cols >= C are zero)
    b = b_ref[...]                                    # [1, Cp]   f32
    logits = jnp.dot(x, w, preferred_element_type=jnp.float32) + b   # [tm, Cp]
    out_ref[...] = logits                             # lane-dense -> unmasked store

    tm, cp = logits.shape
    lane = lax.broadcasted_iota(jnp.int32, (tm, cp), 1)
    valid = lane < n_classes                          # mask padded class columns

    # ---- logits^2 computed once; reused for jac_loss and sradius ----
    sq = jnp.where(valid, logits * logits, 0.0)
    rowsq = jnp.sum(sq, axis=-1, keepdims=True)                       # [tm, 1]
    srad = jnp.sqrt(rowsq / jnp.float32(n_classes))                   # [tm, 1]

    # ---- per-example cross-entropy (stable logsumexp over real classes) ----
    masked_logits = jnp.where(valid, logits, jnp.float32(-1e30))
    m = jnp.max(masked_logits, axis=-1, keepdims=True)                # [tm, 1]
    lse = m + jnp.log(jnp.sum(jnp.exp(masked_logits - m), axis=-1,
                              keepdims=True))
    onehot = lane == lab_ref[...]                                     # labels < n_classes
    picked = jnp.sum(jnp.where(onehot, logits, 0.0), axis=-1, keepdims=True)
    ce = lse - picked                                                 # [tm, 1]

    # ---- pack per-row stats into one lane-dense block ----
    #   lane 0 = sradius, lane 1 = per-example CE, lane 2 = sum(logits^2)
    stats = jnp.where(lane == 0, srad, 0.0)
    stats = jnp.where(lane == 1, ce, stats)
    stats = jnp.where(lane == 2, rowsq, stats)
    stats_ref[...] = stats


def full_model_forward(x, w, b, labels):
    """x: [B, D] f32, w: [D, C] f32, b: [C] f32, labels: [B] int.

    Returns (loss [1], jac_loss [1], outputs [B, C], sradius [B, 1]).
    """
    B, D = x.shape
    C = w.shape[1]

    c_pad = _round_up(C, LANE)                  # lane-dense class dim
    tm = min(128, _round_up(B, SUBLANE))        # batch tile (multiple of 8)
    b_pad = _round_up(B, tm)
    nb = b_pad // tm

    x_p = jnp.zeros((b_pad, D), jnp.float32).at[:B].set(x.astype(jnp.float32))
    w_p = jnp.zeros((D, c_pad), jnp.float32).at[:, :C].set(w.astype(jnp.float32))
    bias_p = jnp.zeros((1, c_pad), jnp.float32).at[0, :C].set(b.astype(jnp.float32))
    lab_p = jnp.zeros((b_pad, 1), jnp.int32).at[:B, 0].set(labels.astype(jnp.int32))

    kernel = functools.partial(_fullmodel_kernel, n_classes=C)

    logits_p, stats = pl.pallas_call(
        kernel,
        out_shape=(
            jax.ShapeDtypeStruct((b_pad, c_pad), jnp.float32),   # padded logits
            jax.ShapeDtypeStruct((b_pad, c_pad), jnp.float32),   # packed per-row stats
        ),
        grid=(nb,),
        in_specs=[
            pl.BlockSpec((tm, D), lambda i: (i, 0)),       # x tile
            pl.BlockSpec((D, c_pad), lambda i: (0, 0)),    # W (resident)
            pl.BlockSpec((1, c_pad), lambda i: (0, 0)),    # bias (resident)
            pl.BlockSpec((tm, 1), lambda i: (i, 0)),       # labels tile
        ],
        out_specs=(
            pl.BlockSpec((tm, c_pad), lambda i: (i, 0)),
            pl.BlockSpec((tm, c_pad), lambda i: (i, 0)),
        ),
        compiler_params=pltpu.CompilerParams(
            dimension_semantics=("parallel",),             # independent B tiles
            vmem_limit_bytes=48 * 1024 * 1024,             # safe on v5e/v6e/v7x
        ),
    )(x_p, w_p, bias_p, lab_p)

    outputs = logits_p[:B, :C]
    sradius = stats[:B, 0:1]
    loss = jnp.mean(stats[:B, 1]).reshape(1)
    jac_loss = (jnp.sum(stats[:B, 2]) / jnp.float32(B * C)).reshape(1)
    return loss, jac_loss, outputs, sradius


if __name__ == "__main__":
    B, D, C = 8, 32, 16  # batch, feature dim, num classes

    key = jax.random.PRNGKey(0)
    kx, kw, kb, kl = jax.random.split(key, 4)
    x = jax.random.normal(kx, (B, D), dtype=jnp.float32)
    w = jax.random.normal(kw, (D, C), dtype=jnp.float32) * 0.1
    b = jax.random.normal(kb, (C,), dtype=jnp.float32) * 0.1
    labels = jax.random.randint(kl, (B,), 0, C, dtype=jnp.int32)

    loss, jac_loss, outputs, sradius = full_model_forward(x, w, b, labels)
    jax.block_until_ready((loss, jac_loss, outputs, sradius))

    # Pure-JAX reference check
    logits_ref = x @ w + b
    lse = jax.nn.logsumexp(logits_ref, axis=-1)
    loss_ref = jnp.mean(lse - logits_ref[jnp.arange(B), labels])
    jac_ref = jnp.mean(logits_ref * logits_ref)
    srad_ref = jnp.sqrt(jnp.sum(logits_ref * logits_ref, axis=-1,
                                keepdims=True) / C)

    assert outputs.shape == (B, C) and loss.shape == (1,)
    assert jac_loss.shape == (1,) and sradius.shape == (B, 1)
    assert jnp.allclose(outputs, logits_ref, atol=1e-4, rtol=1e-4)
    assert jnp.allclose(loss[0], loss_ref, atol=1e-4, rtol=1e-4)
    assert jnp.allclose(jac_loss[0], jac_ref, atol=1e-4, rtol=1e-4)
    assert jnp.allclose(sradius, srad_ref, atol=1e-4, rtol=1e-4)

    print("KERNEL_OK")
</pallas_src>

<mosaic_0001>
module attributes {stable_mosaic.version = 11 : i64} {
  func.func @_fullmodel_kernel(%arg0: i32, %arg1: memref<8x32xf32, #tpu.memory_space<vmem>>, %arg2: memref<32x128xf32, #tpu.memory_space<vmem>>, %arg3: memref<1x128xf32, #tpu.memory_space<vmem>>, %arg4: memref<8x1xi32, #tpu.memory_space<vmem>>, %arg5: memref<8x128xf32, #tpu.memory_space<vmem>>, %arg6: memref<8x128xf32, #tpu.memory_space<vmem>>) attributes {dimension_semantics = [#tpu.dimension_semantics<parallel>], iteration_bounds = array<i64: 1>, scalar_prefetch = 0 : i64, scratch_operands = 0 : i64, tpu.core_type = #tpu.core_type<tc>, window_params = [{transform_indices = @transform_0, window_bounds = array<i64: 8, 32>}, {pipeline_mode = #tpu.pipeline_mode<synchronous>, transform_indices = @transform_1, window_bounds = array<i64: 32, 128>}, {pipeline_mode = #tpu.pipeline_mode<synchronous>, transform_indices = @transform_2, window_bounds = array<i64: 1, 128>}, {transform_indices = @transform_3, window_bounds = array<i64: 8, 1>}, {transform_indices = @transform_4, window_bounds = array<i64: 8, 128>}, {transform_indices = @transform_5, window_bounds = array<i64: 8, 128>}]} {
    %c0 = arith.constant 0 : index
    %c0_0 = arith.constant 0 : index
    %0 = vector.load %arg1[%c0, %c0_0] : memref<8x32xf32, #tpu.memory_space<vmem>>, vector<8x32xf32>
    %c0_1 = arith.constant 0 : index
    %c0_2 = arith.constant 0 : index
    %1 = vector.load %arg2[%c0_1, %c0_2] : memref<32x128xf32, #tpu.memory_space<vmem>>, vector<32x128xf32>
    %c0_3 = arith.constant 0 : index
    %c0_4 = arith.constant 0 : index
    %2 = vector.load %arg3[%c0_3, %c0_4] : memref<1x128xf32, #tpu.memory_space<vmem>>, vector<1x128xf32>
    %cst = arith.constant dense<0.000000e+00> : vector<8x128xf32>
    %3 = tpu.matmul %0, %1, %cst {dimension_numbers = #tpu.dot_dimension_numbers<[1], [0], [0], [1], [0, 0, 1, 1], [], []>} : vector<8x32xf32>, vector<32x128xf32>, vector<8x128xf32> -> vector<8x128xf32>
    %4 = vector.broadcast %2 : vector<1x128xf32> to vector<8x128xf32>
    %5 = arith.addf %3, %4 : vector<8x128xf32>
    %c0_5 = arith.constant 0 : index
    %c0_6 = arith.constant 0 : index
    %6 = vector.load %arg5[%c0_5, %c0_6] : memref<8x128xf32, #tpu.memory_space<vmem>>, vector<8x128xf32>
    tpu.vector_store %arg5[%c0_5, %c0_6], %5 {strides = array<i32>} : memref<8x128xf32, #tpu.memory_space<vmem>>, vector<8x128xf32>,
    %7 = tpu.iota {dimensions = array<i32: 1>} : vector<8x128xi32>
    %c16_i32 = arith.constant 16 : i32
    %8 = vector.broadcast %c16_i32 : i32 to vector<8x128xi32>
    %9 = arith.cmpi slt, %7, %8 : vector<8x128xi32>
    %10 = arith.mulf %5, %5 : vector<8x128xf32>
    %cst_7 = arith.constant 0.000000e+00 : f32
    %11 = vector.broadcast %cst_7 : f32 to vector<8x128xf32>
    %12 = arith.select %9, %10, %11 : vector<8x128xi1>, vector<8x128xf32>
    %cst_8 = arith.constant dense<0.000000e+00> : vector<8xf32>
    %13 = vector.multi_reduction <add>, %12, %cst_8 [1] : vector<8x128xf32> to vector<8xf32>
    %14 = vector.shape_cast %13 : vector<8xf32> to vector<8x1xf32>
    %cst_9 = arith.constant 1.600000e+01 : f32
    %15 = vector.broadcast %cst_9 : f32 to vector<8x1xf32>
    %16 = arith.divf %14, %15 : vector<8x1xf32>
    %17 = math.sqrt %16 : vector<8x1xf32>
    %cst_10 = arith.constant -1.000000e+30 : f32
    %18 = vector.broadcast %cst_10 : f32 to vector<8x128xf32>
    %19 = arith.select %9, %5, %18 : vector<8x128xi1>, vector<8x128xf32>
    %cst_11 = arith.constant dense<0xFF800000> : vector<8xf32>
    %20 = vector.multi_reduction <maximumf>, %19, %cst_11 [1] : vector<8x128xf32> to vector<8xf32>
    %21 = vector.shape_cast %20 : vector<8xf32> to vector<8x1xf32>
    %22 = vector.broadcast %21 : vector<8x1xf32> to vector<8x128xf32>
    %23 = arith.subf %19, %22 : vector<8x128xf32>
    %24 = math.exp %23 : vector<8x128xf32>
    %cst_12 = arith.constant dense<0.000000e+00> : vector<8xf32>
    %25 = vector.multi_reduction <add>, %24, %cst_12 [1] : vector<8x128xf32> to vector<8xf32>
    %26 = vector.shape_cast %25 : vector<8xf32> to vector<8x1xf32>
    %27 = math.log %26 : vector<8x1xf32>
    %28 = arith.addf %21, %27 : vector<8x1xf32>
    %c0_13 = arith.constant 0 : index
    %c0_14 = arith.constant 0 : index
    %29 = vector.load %arg4[%c0_13, %c0_14] : memref<8x1xi32, #tpu.memory_space<vmem>>, vector<8x1xi32>
    %30 = vector.broadcast %29 : vector<8x1xi32> to vector<8x128xi32>
    %31 = arith.cmpi eq, %7, %30 : vector<8x128xi32>
    %cst_15 = arith.constant 0.000000e+00 : f32
    %32 = vector.broadcast %cst_15 : f32 to vector<8x128xf32>
    %33 = arith.select %31, %5, %32 : vector<8x128xi1>, vector<8x128xf32>
    %cst_16 = arith.constant dense<0.000000e+00> : vector<8xf32>
    %34 = vector.multi_reduction <add>, %33, %cst_16 [1] : vector<8x128xf32> to vector<8xf32>
    %35 = vector.shape_cast %34 : vector<8xf32> to vector<8x1xf32>
    %36 = arith.subf %28, %35 : vector<8x1xf32>
    %c0_i32 = arith.constant 0 : i32
    %37 = vector.broadcast %c0_i32 : i32 to vector<8x128xi32>
    %38 = arith.cmpi eq, %7, %37 : vector<8x128xi32>
    %cst_17 = arith.constant 0.000000e+00 : f32
    %39 = vector.shape_cast %17 : vector<8x1xf32> to vector<8x1xf32>
    %40 = vector.broadcast %39 : vector<8x1xf32> to vector<8x128xf32>
    %41 = vector.broadcast %cst_17 : f32 to vector<8x128xf32>
    %42 = arith.select %38, %40, %41 : vector<8x128xi1>, vector<8x128xf32>
    %c1_i32 = arith.constant 1 : i32
    %43 = vector.broadcast %c1_i32 : i32 to vector<8x128xi32>
    %44 = arith.cmpi eq, %7, %43 : vector<8x128xi32>
    %45 = vector.shape_cast %36 : vector<8x1xf32> to vector<8x1xf32>
    %46 = vector.broadcast %45 : vector<8x1xf32> to vector<8x128xf32>
    %47 = arith.select %44, %46, %42 : vector<8x128xi1>, vector<8x128xf32>
    %c2_i32 = arith.constant 2 : i32
    %48 = vector.broadcast %c2_i32 : i32 to vector<8x128xi32>
    %49 = arith.cmpi eq, %7, %48 : vector<8x128xi32>
    %50 = vector.shape_cast %14 : vector<8x1xf32> to vector<8x1xf32>
    %51 = vector.broadcast %50 : vector<8x1xf32> to vector<8x128xf32>
    %52 = arith.select %49, %51, %47 : vector<8x128xi1>, vector<8x128xf32>
    %c0_18 = arith.constant 0 : index
    %c0_19 = arith.constant 0 : index
    %53 = vector.load %arg6[%c0_18, %c0_19] : memref<8x128xf32, #tpu.memory_space<vmem>>, vector<8x128xf32>
    tpu.vector_store %arg6[%c0_18, %c0_19], %52 {strides = array<i32>} : memref<8x128xf32, #tpu.memory_space<vmem>>, vector<8x128xf32>,
    return
  }
  func.func @transform_0(%arg0: i32) -> (i32, i32) {
    %c0_i32 = arith.constant 0 : i32
    %c0_i32_0 = arith.constant 0 : i32
    return %arg0, %c0_i32 : i32, i32
  }
  func.func @transform_1(%arg0: i32) -> (i32, i32) {
    %c0_i32 = arith.constant 0 : i32
    %c0_i32_0 = arith.constant 0 : i32
    %c0_i32_1 = arith.constant 0 : i32
    return %c0_i32, %c0_i32_0 : i32, i32
  }
  func.func @transform_2(%arg0: i32) -> (i32, i32) {
    %c0_i32 = arith.constant 0 : i32
    %c0_i32_0 = arith.constant 0 : i32
    %c0_i32_1 = arith.constant 0 : i32
    return %c0_i32, %c0_i32_0 : i32, i32
  }
  func.func @transform_3(%arg0: i32) -> (i32, i32) {
    %c0_i32 = arith.constant 0 : i32
    %c0_i32_0 = arith.constant 0 : i32
    return %arg0, %c0_i32 : i32, i32
  }
  func.func @transform_4(%arg0: i32) -> (i32, i32) {
    %c0_i32 = arith.constant 0 : i32
    %c0_i32_0 = arith.constant 0 : i32
    return %arg0, %c0_i32 : i32, i32
  }
  func.func @transform_5(%arg0: i32) -> (i32, i32) {
    %c0_i32 = arith.constant 0 : i32
    %c0_i32_0 = arith.constant 0 : i32
    return %arg0, %c0_i32 : i32, i32
  }
}

</mosaic_0001>

<llo_original>
// kernel: tpu_custom_call.1
$region0: #{tpu_custom_call.1}
  #allocation0 [shape = 'u32[]', space=smem, size = 0x4, offset = 0x4, fixed_abs, tag = 'smem constant byte address 0x4 - core index']
  #allocation1 [shape = 'u32[144,128]{1,0:T(1,128)}', space=vmem, size = 0x12000, scoped, tag = 'internal scratch']
  %s0 = inlined_call_operand.vmem [shape: f32[8,32], index: 0, kind: input, shape index: {}]
  %s1 = inlined_call_operand.hbm [shape: f32[32,128], index: 1, kind: input, shape index: {}]
  %s2 = inlined_call_operand.vmem [shape: f32[1,128], index: 2, kind: input, shape index: {}]
  %s3 = inlined_call_operand.vmem [shape: s32[8,1], index: 3, kind: input, shape index: {}]
  %s4 = inlined_call_operand.hbm [shape: f32[8,128], index: 4, kind: output, shape index: {0}]
  %s5 = inlined_call_operand.hbm [shape: f32[8,128], index: 5, kind: output, shape index: {1}]
  %6 = xla_tuple %s4, %s5
  %s7 = sld [smem:[#allocation0]]
  $region38: #{tpu_custom_call.1} parent=0
    _
  %s9 = ssub.s32 1, %s7
  %s10 = scalar_select 0, %s9, %s7
  $region1: #{tpu_custom_call.1} parent=0
    #allocation2 [shape = 'u8[16384]{0}', space=vmem, size = 0x4000, scoped, tag = 'input window, operand 1, single buffered']
    #allocation3 [shape = 's32[1]{0}', space=sflag, size = 0x4, scoped, tag = 'scoped memory for tpu_custom_call.1']
    #allocation4 [shape = 's32[1]{0}', space=sflag, size = 0x4, scoped, tag = 'scoped memory for tpu_custom_call.1']
    #allocation5 [shape = 'u8[4096]{0}', space=vmem, size = 0x1000, scoped, tag = 'output window, operand 0, single buffered']
    #allocation6 [shape = 'u8[4096]{0}', space=vmem, size = 0x1000, scoped, tag = 'output window, operand 1, single buffered']
    #allocation7 [shape = 's32[1]{0}', space=sflag, size = 0x4, scoped, tag = 'scoped memory for tpu_custom_call.1']
    %11 = vsyncpa [#allocation3], 0
    %12 = vsyncpa [#allocation4], 0
    %13 = vsyncpa [#allocation7], 0
    // Predicated region
    $region2: #{tpu_custom_call.1} parent=1 // pred_check
      _
    $region3: #{tpu_custom_call.1} parent=1 // pred_check_branch
      %15 = sbr.rel (0) target = $region5
    $region4: #{tpu_custom_call.1} parent=1 // pred_region
      _
    $region5: #{tpu_custom_call.1} parent=1 // pred_fallthru
      _
    // Predicated region
    $region6: #{tpu_custom_call.1} parent=1 // pred_check
      _
    $region7: #{tpu_custom_call.1} parent=1 // pred_check_branch
      %17 = sbr.rel (0) target = $region9
    $region8: #{tpu_custom_call.1} parent=1 // pred_region
      %s19 = ssub.s32 512, 512
      %20 = vsyncadd [#allocation3], %s19
      %s21 = sshll.u32 [#allocation2], 4
      %s22 = int_to_ptr.vmem [resolvable:$true] %s21
      %27 = dma.hbm_to_vmem [thread:$0]  %s1, 512, %s22, [#allocation3], 128, 128, 8
    $region9: #{tpu_custom_call.1} parent=1 // pred_fallthru
      _
    // Predicated region
    $region10: #{tpu_custom_call.1} parent=1 // pred_check
      _
    $region11: #{tpu_custom_call.1} parent=1 // pred_check_branch
      %29 = sbr.rel (0) target = $region13
    $region12: #{tpu_custom_call.1} parent=1 // pred_region
      _
    $region13: #{tpu_custom_call.1} parent=1 // pred_fallthru
      _
    // Predicated region
    $region14: #{tpu_custom_call.1} parent=1 // pred_check
      _
    $region15: #{tpu_custom_call.1} parent=1 // pred_check_branch
      %31 = sbr.rel (0) target = $region17
    $region16: #{tpu_custom_call.1} parent=1 // pred_region
      _
    $region17: #{tpu_custom_call.1} parent=1 // pred_fallthru
      _
    // Predicated region
    $region18: #{tpu_custom_call.1} parent=1 // pred_check
      _
    $region19: #{tpu_custom_call.1} parent=1 // pred_check_branch
      %33 = sbr.rel (0) target = $region21
    $region20: #{tpu_custom_call.1} parent=1 // pred_region
      %34 = dma.done [#allocation3], 512
    $region21: #{tpu_custom_call.1} parent=1 // pred_fallthru
      _
    %v35 = vld [vmem:[%s0] sm:$0xff]
    %v36 = vld [vmem:[#allocation2] sm:$0xff]
    %v37 = vld [vmem:[#allocation2 + $0x8] sm:$0xff]
    %v38 = vld [vmem:[#allocation2 + $0x10] sm:$0xff]
    %v39 = vld [vmem:[#allocation2 + $0x18] sm:$0xff]
    %v40 = vld [vmem:[%s2] sm:$0x1]
    %v42 = vlaneseq
    %v43 = vshrl.u32 %v42, 7
    %v44 = vsub.s32 0, %v43
    %v45 = vrot.slane %v40, %v44
    %vm47 = vcmask 261120
    %v49 = vsel %vm47, %v35, 0
    %51 = vmatprep.subr.mxu0 0.0
    %52 = vmatpush1.msra.mxu0 %v36
    %53 = vmatprep.subr.mxu0 0.0
    %54 = vmatpush1.msra.mxu0 %v37
    %55 = vmatprep.subr.mxu0 0.0
    %56 = vmatpush1.msra.mxu0 %v38
    %57 = vmatprep.subr.mxu0 0.0
    %58 = vmatpush1.msra.mxu0 %v39
    %59 = vmatprep.subr.mxu0 0.0
    %60 = vmatpush1.msra.mxu0 0.0
    %61 = vmatprep.subr.mxu0 0.0
    %62 = vmatpush1.msra.mxu0 0.0
    %63 = vmatprep.subr.mxu0 0.0
    %64 = vmatpush1.msra.mxu0 0.0
    %65 = vmatprep.subr.mxu0 0.0
    %66 = vmatpush1.msra.mxu0 0.0
    %67 = vmatprep.subr.mxu0 0.0
    %68 = vmatpush1.msra.mxu0 0.0
    %69 = vmatprep.subr.mxu0 0.0
    %70 = vmatpush1.msra.mxu0 0.0
    %71 = vmatprep.subr.mxu0 0.0
    %72 = vmatpush1.msra.mxu0 0.0
    %73 = vmatprep.subr.mxu0 0.0
    %74 = vmatpush1.msra.mxu0 0.0
    %75 = vmatprep.subr.mxu0 0.0
    %76 = vmatpush1.msra.mxu0 0.0
    %77 = vmatprep.subr.mxu0 0.0
    %78 = vmatpush1.msra.mxu0 0.0
    %79 = vmatprep.subr.mxu0 0.0
    %80 = vmatpush1.msra.mxu0 0.0
    %81 = vmatprep.subr.mxu0 0.0
    %82 = vmatpush1.msra.mxu0 0.0
    %83 = vmatprep.subr.mxu0 0.0
    %84 = vmatpush1.msra.mxu0 0.0
    %85 = vmatprep.subr.mxu0 0.0
    %86 = vmatpush1.msra.mxu0 0.0
    %87 = vmatprep.subr.mxu0 0.0
    %88 = vmatpush1.msra.mxu0 0.0
    %89 = vmatprep.subr.mxu0 0.0
    %90 = vmatpush1.msra.mxu0 0.0
    %91 = vmatprep.subr.mxu0 0.0
    %92 = vmatpush1.msra.mxu0 0.0
    %93 = vmatprep.subr.mxu0 0.0
    %94 = vmatpush1.msra.mxu0 0.0
    %95 = vmatprep.subr.mxu0 0.0
    %96 = vmatpush1.msra.mxu0 0.0
    %97 = vmatprep.subr.mxu0 0.0
    %98 = vmatpush1.msra.mxu0 0.0
    %99 = vmatprep.subr.mxu0 0.0
    %100 = vmatpush1.msra.mxu0 0.0
    %101 = vmatprep.subr.mxu0 0.0
    %102 = vmatpush1.msra.mxu0 0.0
    %103 = vmatprep.subr.mxu0 0.0
    %104 = vmatpush1.msra.mxu0 0.0
    %105 = vmatprep.subr.mxu0 0.0
    %106 = vmatpush1.msra.mxu0 0.0
    %107 = vmatprep.subr.mxu0 0.0
    %108 = vmatpush1.msra.mxu0 0.0
    %109 = vmatprep.subr.mxu0 0.0
    %110 = vmatpush1.msra.mxu0 0.0
    %111 = vmatprep.subr.mxu0 0.0
    %112 = vmatpush1.msra.mxu0 0.0
    %113 = vmatprep.subr.mxu0 0.0
    %114 = vmatpush1.msra.mxu0 0.0
    %115 = vmatprep.mubr.f32.mxu0 0.0
    %116 = vmatmul.mubr.f32.gmra.mrb[0].mxu0 %v49
    %v117 = vpop.f32.mrb[0].mxu0
    %v118 = vadd.f32 %v45, %v117
    %v119 = vpop.f32.mrb[0].mxu0
    %120 = vdwg.mxu0
    %121 = vst [vmem:[#allocation5] sm:$0xff] %v118
    %v122 = vlaneseq
    %v123 = vand.u32 %v122, 127
    %vm124 = vcmp.lt.s32.totalorder %v123, 16
    %v125 = vmul.f32 %v118, %v118
    %v126 = vsel %vm124, %v125, 0.0
    %127 = vadd.xlane.f32.xlu0 %v126
    %v128 = vpop.xlane.xlu0 %127
    %v129 = vrcp.pop 16.0
    %v130 = vmul.f32 %v128, %v129
    %v131 = vrsqrt.pop %v130
    %v132 = vmul.f32 %v130, %v131
    %vm133 = vcmp.eq.f32.partialorder %v130, inf
    %v134 = vsel %vm133, %v130, %v132
    %vm135 = vcmp.eq.f32.partialorder %v130, 0.0
    %v136 = vand.u32 %v130, 2147483648
    %v137 = vsel %vm135, %v136, %v134
    %v138 = vsel %vm124, %v118, -1e+30
    %139 = vmax.xlane.f32.xlu0 %v138
    %v140 = vpop.xlane.xlu0 %139
    %v141 = vsub.f32 %v138, %v140
    %v142 = vmul.f32 %v141, 1.442695
    %v143 = vpow.pop %v142
    %144 = vadd.xlane.f32.xlu0 %v143
    %v145 = vpop.xlane.xlu0 %144
    %v146 = vlog2.pop %v145
    %v147 = vmul.f32 %v146, 0.6931472
    %v148 = vadd.f32 %v140, %v147
    %v149 = vld [vmem:[%s3] sm:$0xff]
    %150 = vset.pattern.permute.xlu0 0
    %151 = vperm.xlu0 %150, %v149
    %v152 = vpop.permute.xlu0 %151
    %vm153 = vcmp.eq.s32.totalorder %v123, %v152
    %v154 = vsel %vm153, %v118, 0.0
    %155 = vadd.xlane.f32.xlu0 %v154
    %v156 = vpop.xlane.xlu0 %155
    %v157 = vsub.f32 %v148, %v156
    %vm158 = vcmp.eq.s32.totalorder %v123, 0
    %v159 = vsel %vm158, %v137, 0.0
    %vm160 = vcmp.eq.s32.totalorder %v123, 1
    %v161 = vsel %vm160, %v157, %v159
    %vm162 = vcmp.eq.s32.totalorder %v123, 2
    %v163 = vsel %vm162, %v128, %v161
    %164 = vst [vmem:[#allocation6] sm:$0xff] %v163
    // Predicated region
    $region22: #{tpu_custom_call.1} parent=1 // pred_check
      _
    $region23: #{tpu_custom_call.1} parent=1 // pred_check_branch
      %166 = sbr.rel (0) target = $region25
    $region24: #{tpu_custom_call.1} parent=1 // pred_region
      %s168 = ssub.s32 128, 128
      %169 = vsyncadd [#allocation4], %s168
      %s171 = sshll.u32 [#allocation5], 4
      %s172 = int_to_ptr.vmem [resolvable:$true] %s171
      %174 = dma.vmem_to_hbm [thread:$0]  %s172, 128, %s4, [#allocation4]
    $region25: #{tpu_custom_call.1} parent=1 // pred_fallthru
      _
    // Predicated region
    $region26: #{tpu_custom_call.1} parent=1 // pred_check
      _
    $region27: #{tpu_custom_call.1} parent=1 // pred_check_branch
      %176 = sbr.rel (0) target = $region29
    $region28: #{tpu_custom_call.1} parent=1 // pred_region
      %s178 = ssub.s32 128, 128
      %179 = vsyncadd [#allocation7], %s178
      %s181 = sshll.u32 [#allocation6], 4
      %s182 = int_to_ptr.vmem [resolvable:$true] %s181
      %184 = dma.vmem_to_hbm [thread:$0]  %s182, 128, %s5, [#allocation7]
    $region29: #{tpu_custom_call.1} parent=1 // pred_fallthru
      _
    // Predicated region
    $region30: #{tpu_custom_call.1} parent=1 // pred_check
      _
    $region31: #{tpu_custom_call.1} parent=1 // pred_check_branch
      %186 = sbr.rel (0) target = $region33
    $region32: #{tpu_custom_call.1} parent=1 // pred_region
      %187 = dma.done [#allocation4], 128
    $region33: #{tpu_custom_call.1} parent=1 // pred_fallthru
      _
    // Predicated region
    $region34: #{tpu_custom_call.1} parent=1 // pred_check
      _
    $region35: #{tpu_custom_call.1} parent=1 // pred_check_branch
      %189 = sbr.rel (0) target = $region37
    $region36: #{tpu_custom_call.1} parent=1 // pred_region
      %190 = dma.done [#allocation7], 128
    $region37: #{tpu_custom_call.1} parent=1 // pred_fallthru
      _
    %191 = vsyncpa [#allocation3], 1
    %192 = vsyncpa [#allocation4], 1
    %193 = vsyncpa [#allocation7], 1

</llo_original>
